<compile_context>
chip_gen: v6e
topology: v6e:2x2x1
jax: 0.10.0
libtpu: 0.0.40
codegen_flags: <defaults>
</compile_context>

<pallas_src>
import functools

import jax
import jax.numpy as jnp
from jax import lax
from jax.experimental import pallas as pl
from jax.experimental.pallas import tpu as pltpu

EPS = 1e-5
_HALO = 16  # halo rows fetched in 16-row chunks (safe sublane granularity for bf16)


def _conv_stats_kernel(*refs, th, has_halo):
    """Fused depthwise-3x3 + pointwise-1x1 for one (batch, row-strip) tile.

    Emits the conv result z (bf16, lane-dense (th, W*Cout)) plus this tile's
    per-channel [sum(z); sum(z*z)] so BatchNorm statistics are finalized by a
    tiny cross-tile reduction (phase 1 of the two-pass BN).
    """
    if has_halo:
        xc_ref, xt_ref, xb_ref, m_ref, sel_ref, z_ref, st_ref = refs
    else:
        xc_ref, m_ref, sel_ref, z_ref, st_ref = refs

    xc = xc_ref[0]                                          # (th, w*cin) bf16
    if has_halo:
        i = pl.program_id(1)
        top = xt_ref[0, _HALO - 1:_HALO, :]                 # row just above the strip
        bot = xb_ref[0, 0:1, :]                             # row just below the strip
        # Zero the halo rows that fall outside the image (padding=1 semantics).
        top = jnp.where(i == 0, jnp.zeros_like(top), top)
        bot = jnp.where(i == pl.num_programs(1) - 1, jnp.zeros_like(bot), bot)
    else:
        # Strip covers the whole height: both halo rows are zero padding.
        top = jnp.zeros_like(xc[0:1])
        bot = jnp.zeros_like(xc[0:1])

    rows = jnp.concatenate([top, xc, bot], axis=0)          # (th+2, w*cin) bf16

    # depthwise(3x3)+pointwise(1x1) folded into 3 bf16 MXU matmuls (one per
    # kernel-row offset).  Column shifts and edge zeros are baked into the
    # packed weight, so no in-kernel lane padding / relayout is needed and the
    # result is directly in the lane-dense (th, w*cout) store layout.
    z = jnp.dot(rows[0:th], m_ref[0], preferred_element_type=jnp.float32)
    z = z + jnp.dot(rows[1:th + 1], m_ref[1], preferred_element_type=jnp.float32)
    z = z + jnp.dot(rows[2:th + 2], m_ref[2], preferred_element_type=jnp.float32)

    z_ref[0] = z.astype(z_ref.dtype)

    # Per-channel partial sums from the f32 accumulator.  Stack [sum, sum_sq]
    # and do a single small matmul against a (w*cout, cout) "sum over w"
    # selection matrix — one MXU push/drain, no lane->sublane relayout.
    sums = jnp.concatenate([jnp.sum(z, axis=0, keepdims=True),
                            jnp.sum(z * z, axis=0, keepdims=True)], axis=0)
    st_ref[0, 0] = jnp.dot(sums, sel_ref[...], preferred_element_type=jnp.float32)


def _pick_row_tile(h):
    """Whole image when H <= 256; otherwise the largest divisor of H that is a
    multiple of _HALO and <= 256 (fallback: whole image)."""
    if h <= 256:
        return h
    best = None
    for th in range(_HALO, 257, _HALO):
        if h % th == 0:
            best = th
    return best if best is not None else h


def _vmem_limit_bytes():
    """~64 MiB on 128-MiB-VMEM parts (v5e/v6e), ~32 MiB on v7x (64 MiB VMEM)."""
    try:
        cap = pltpu.get_tpu_info().vmem_capacity_bytes
        return int(min(64 * 1024 * 1024, cap // 2))
    except Exception:
        return 32 * 1024 * 1024


@functools.partial(jax.jit, static_argnames=("stride", "use_residual"))
def depthwise_separable_conv(x_nchw, dw_w, pw_w, gamma, beta, *, stride=1,
                             use_residual=False):
    """x_nchw: (N,Cin,H,W); dw_w: (Cin,1,3,3); pw_w: (Cout,Cin,1,1)."""
    assert stride == 1  # TODO(synk): stride > 1 not implemented (module default is 1)
    n, cin, h, w = x_nchw.shape
    cout = pw_w.shape[0]
    if use_residual:
        assert cin == cout, "residual path requires in_channels == out_channels"

    th = _pick_row_tile(h)
    n_row_tiles = h // th
    has_halo = n_row_tiles > 1
    if has_halo:
        assert th % _HALO == 0 and h % _HALO == 0, "halo fetch needs 16-row alignment"

    # NHWC, then merge (W, C) into one lane-dense minor dim; bf16 for the conv
    # inputs (f32 accumulation inside the kernel).  No padded HBM copy.
    x_nhwc = jnp.transpose(x_nchw, (0, 2, 3, 1))                       # (n,h,w,cin)
    x2 = x_nhwc.reshape(n, h, w * cin).astype(jnp.bfloat16)

    # Pack depthwise (Cin,3,3) and pointwise (Cin,Cout) weights into three
    # (W*Cin, W*Cout) bf16 matrices (one per kernel-row offset); column shifts
    # and the width-edge zero padding are baked in via eye(w, w, k=1-dj):
    #   M[di][wp*Cin + c, wd*Cout + co] = dw[c,di,dj]*pw[co,c] with dj = wp-wd+1
    dwk = jnp.transpose(dw_w[:, 0], (1, 2, 0)).astype(jnp.float32)      # (3,3,cin)
    pwt = jnp.transpose(pw_w[:, :, 0, 0], (1, 0)).astype(jnp.float32)   # (cin,cout)
    k4 = dwk[:, :, :, None] * pwt[None, None, :, :]                     # (3,3,cin,cout)
    shifts = jnp.stack([jnp.eye(w, w, k=1 - dj, dtype=jnp.float32)
                        for dj in range(3)])                            # (3,w,w)
    m = jnp.einsum("jpw,djcq->dpcwq", shifts, k4).reshape(
        3, w * cin, w * cout).astype(jnp.bfloat16)
    # "sum over w" selection matrix for per-channel partial sums (f32).
    sel = jnp.tile(jnp.eye(cout, dtype=jnp.float32), (w, 1))            # (w*cout,cout)

    cparams = pltpu.CompilerParams(
        dimension_semantics=("parallel", "parallel"),
        vmem_limit_bytes=_vmem_limit_bytes(),
    )

    # ---- Pallas kernel: conv (depthwise+pointwise) + BN partial statistics ----
    kern = functools.partial(_conv_stats_kernel, th=th, has_halo=has_halo)
    in_specs = [pl.BlockSpec((1, th, w * cin), lambda b, i: (b, i, 0))]
    args = [x2]
    if has_halo:
        in_specs += [
            # 16-row chunk containing the row just above the strip (clamped)
            pl.BlockSpec((1, _HALO, w * cin),
                         lambda b, i: (b, jnp.maximum(i * th - 1, 0) // _HALO, 0)),
            # 16-row chunk containing the row just below the strip (clamped)
            pl.BlockSpec((1, _HALO, w * cin),
                         lambda b, i: (b, jnp.minimum((i + 1) * th, h - 1) // _HALO, 0)),
        ]
        args += [x2, x2]
    in_specs += [
        pl.BlockSpec((3, w * cin, w * cout), lambda b, i: (0, 0, 0)),
        pl.BlockSpec((w * cout, cout), lambda b, i: (0, 0)),
    ]
    args += [m, sel]

    z2, stats = pl.pallas_call(
        kern,
        grid=(n, n_row_tiles),
        in_specs=in_specs,
        out_specs=[
            pl.BlockSpec((1, th, w * cout), lambda b, i: (b, i, 0)),
            pl.BlockSpec((1, 1, 2, cout), lambda b, i: (b, i, 0, 0)),
        ],
        out_shape=[
            jax.ShapeDtypeStruct((n, h, w * cout), jnp.bfloat16),
            jax.ShapeDtypeStruct((n, n_row_tiles, 2, cout), jnp.float32),
        ],
        compiler_params=cparams,
    )(*args)

    # ---- finalize global (N,H,W) BatchNorm statistics (tiny f32 reduction) ----
    cnt = jnp.float32(n * h * w)
    s1 = jnp.sum(stats[:, :, 0, :], axis=(0, 1))
    s2 = jnp.sum(stats[:, :, 1, :], axis=(0, 1))
    mean = s1 / cnt
    var = s2 / cnt - mean * mean              # biased variance (training-mode BN)
    # TODO(synk): E[z^2]-E[z]^2 cancels for large-mean activations; switch to a
    # shifted / two-pass finalize if used beyond roughly-centered data.
    scale = gamma.astype(jnp.float32) * lax.rsqrt(var + EPS)
    shift = beta.astype(jnp.float32) - mean * scale

    # ---- BN scale/shift + ReLU (+ residual): plain XLA elementwise, fused by
    # XLA with the mandatory NHWC->NCHW output transpose (no second kernel).
    z4 = z2.reshape(n, h, w, cout).astype(jnp.float32)
    y = jnp.maximum(z4 * scale.reshape(1, 1, 1, cout)
                    + shift.reshape(1, 1, 1, cout), 0.0)
    if use_residual:
        y = y + x_nhwc.astype(jnp.float32)    # residual uses the original-precision x
    return jnp.transpose(y, (0, 3, 1, 2)).astype(x_nchw.dtype)


def reference_forward(x, dw_w, pw_w, gamma, beta, use_residual):
    """Pure-JAX f32 reference matching the PyTorch forward (training-mode BN)."""
    cin = x.shape[1]
    z = lax.conv_general_dilated(x, dw_w, (1, 1), [(1, 1), (1, 1)],
                                 dimension_numbers=("NCHW", "OIHW", "NCHW"),
                                 feature_group_count=cin)
    z = lax.conv_general_dilated(z, pw_w, (1, 1), [(0, 0), (0, 0)],
                                 dimension_numbers=("NCHW", "OIHW", "NCHW"))
    mean = jnp.mean(z, axis=(0, 2, 3), keepdims=True)
    var = jnp.mean((z - mean) ** 2, axis=(0, 2, 3), keepdims=True)
    zn = (z - mean) * lax.rsqrt(var + EPS)
    zn = zn * gamma.reshape(1, -1, 1, 1) + beta.reshape(1, -1, 1, 1)
    r = jnp.maximum(zn, 0.0)
    return r + x if use_residual else r


if __name__ == "__main__":
    key = jax.random.PRNGKey(0)
    N, Cin, H, W = 2, 4, 16, 16
    # bf16 conv inputs / weights / intermediate -> loosened tolerance vs the
    # f32 reference (errors are O(1e-2) after BN normalization; real bugs in
    # the shifted-weight folding would show up as O(1) errors).
    ATOL = RTOL = 1e-1

    # ---- case 1: Cin=4 -> Cout=8, no residual ----
    Cout = 8
    k1, k2, k3 = jax.random.split(key, 3)
    x = jax.random.normal(k1, (N, Cin, H, W), jnp.float32)
    dw_w = jax.random.normal(k2, (Cin, 1, 3, 3), jnp.float32) * 0.3
    pw_w = jax.random.normal(k3, (Cout, Cin, 1, 1), jnp.float32) * 0.3
    gamma = jnp.ones((Cout,), jnp.float32)   # PyTorch BatchNorm2d default init
    beta = jnp.zeros((Cout,), jnp.float32)

    out = depthwise_separable_conv(x, dw_w, pw_w, gamma, beta,
                                   use_residual=False)
    jax.block_until_ready(out)
    ref = reference_forward(x, dw_w, pw_w, gamma, beta, use_residual=False)
    assert out.shape == (N, Cout, H, W)
    assert jnp.allclose(out, ref, atol=ATOL, rtol=RTOL), \
        float(jnp.max(jnp.abs(out - ref)))

    # ---- case 2: Cin=Cout=4, with residual ----
    k4, _ = jax.random.split(k3, 2)
    pw_w2 = jax.random.normal(k4, (Cin, Cin, 1, 1), jnp.float32) * 0.3
    gamma2 = jnp.ones((Cin,), jnp.float32)
    beta2 = jnp.zeros((Cin,), jnp.float32)
    out2 = depthwise_separable_conv(x, dw_w, pw_w2, gamma2, beta2,
                                    use_residual=True)
    jax.block_until_ready(out2)
    ref2 = reference_forward(x, dw_w, pw_w2, gamma2, beta2, use_residual=True)
    assert out2.shape == (N, Cin, H, W)
    assert jnp.allclose(out2, ref2, atol=ATOL, rtol=RTOL), \
        float(jnp.max(jnp.abs(out2 - ref2)))

    print("KERNEL_OK")
</pallas_src>

<mosaic_0001>
module attributes {stable_mosaic.version = 11 : i64} {
  func.func @_conv_stats_kernel(%arg0: i32, %arg1: i32, %arg2: memref<1x16x64xbf16, #tpu.memory_space<vmem>>, %arg3: memref<3x64x128xbf16, #tpu.memory_space<vmem>>, %arg4: memref<128x8xf32, #tpu.memory_space<vmem>>, %arg5: memref<1x16x128xbf16, #tpu.memory_space<vmem>>, %arg6: memref<1x1x2x8xf32, #tpu.memory_space<vmem>>) attributes {dimension_semantics = [#tpu.dimension_semantics<parallel>, #tpu.dimension_semantics<parallel>], iteration_bounds = array<i64: 2, 1>, scalar_prefetch = 0 : i64, scratch_operands = 0 : i64, tpu.core_type = #tpu.core_type<tc>, window_params = [{transform_indices = @transform_0, window_bounds = array<i64: 1, 16, 64>}, {pipeline_mode = #tpu.pipeline_mode<synchronous>, transform_indices = @transform_1, window_bounds = array<i64: 3, 64, 128>}, {pipeline_mode = #tpu.pipeline_mode<synchronous>, transform_indices = @transform_2, window_bounds = array<i64: 128, 8>}, {transform_indices = @transform_3, window_bounds = array<i64: 1, 16, 128>}, {transform_indices = @transform_4, window_bounds = array<i64: 1, 1, 2, 8>}]} {
    %c0 = arith.constant 0 : index
    %c0_0 = arith.constant 0 : index
    %c0_1 = arith.constant 0 : index
    %0 = vector.load %arg2[%c0, %c0_0, %c0_1] : memref<1x16x64xbf16, #tpu.memory_space<vmem>>, vector<1x16x64xbf16>
    %1 = vector.shape_cast %0 : vector<1x16x64xbf16> to vector<16x64xbf16>
    %cst = arith.constant 0.000000e+00 : bf16
    %2 = vector.broadcast %cst : bf16 to vector<1x64xbf16>
    %cst_2 = arith.constant 0.000000e+00 : bf16
    %3 = vector.broadcast %cst_2 : bf16 to vector<1x64xbf16>
    %4 = tpu.concatenate %2, %1, %3 in 0 : vector<1x64xbf16>, vector<16x64xbf16>, vector<1x64xbf16> -> vector<18x64xbf16>
    %5 = vector.extract_strided_slice %4 {offsets = [0, 0], sizes = [16, 64], strides = [1, 1]} : vector<18x64xbf16> to vector<16x64xbf16>
    %c0_3 = arith.constant 0 : index
    %c0_4 = arith.constant 0 : index
    %c0_5 = arith.constant 0 : index
    %6 = vector.load %arg3[%c0_3, %c0_4, %c0_5] : memref<3x64x128xbf16, #tpu.memory_space<vmem>>, vector<1x64x128xbf16>
    %7 = vector.shape_cast %6 : vector<1x64x128xbf16> to vector<64x128xbf16>
    %cst_6 = arith.constant dense<0.000000e+00> : vector<16x128xf32>
    %8 = tpu.matmul %5, %7, %cst_6 {dimension_numbers = #tpu.dot_dimension_numbers<[1], [0], [0], [1], [0, 0, 1, 1], [], []>} : vector<16x64xbf16>, vector<64x128xbf16>, vector<16x128xf32> -> vector<16x128xf32>
    %9 = vector.extract_strided_slice %4 {offsets = [1, 0], sizes = [16, 64], strides = [1, 1]} : vector<18x64xbf16> to vector<16x64xbf16>
    %c1 = arith.constant 1 : index
    %c0_7 = arith.constant 0 : index
    %c0_8 = arith.constant 0 : index
    %10 = vector.load %arg3[%c1, %c0_7, %c0_8] : memref<3x64x128xbf16, #tpu.memory_space<vmem>>, vector<1x64x128xbf16>
    %11 = vector.shape_cast %10 : vector<1x64x128xbf16> to vector<64x128xbf16>
    %cst_9 = arith.constant dense<0.000000e+00> : vector<16x128xf32>
    %12 = tpu.matmul %9, %11, %cst_9 {dimension_numbers = #tpu.dot_dimension_numbers<[1], [0], [0], [1], [0, 0, 1, 1], [], []>} : vector<16x64xbf16>, vector<64x128xbf16>, vector<16x128xf32> -> vector<16x128xf32>
    %13 = arith.addf %8, %12 : vector<16x128xf32>
    %14 = vector.extract_strided_slice %4 {offsets = [2, 0], sizes = [16, 64], strides = [1, 1]} : vector<18x64xbf16> to vector<16x64xbf16>
    %c2 = arith.constant 2 : index
    %c0_10 = arith.constant 0 : index
    %c0_11 = arith.constant 0 : index
    %15 = vector.load %arg3[%c2, %c0_10, %c0_11] : memref<3x64x128xbf16, #tpu.memory_space<vmem>>, vector<1x64x128xbf16>
    %16 = vector.shape_cast %15 : vector<1x64x128xbf16> to vector<64x128xbf16>
    %cst_12 = arith.constant dense<0.000000e+00> : vector<16x128xf32>
    %17 = tpu.matmul %14, %16, %cst_12 {dimension_numbers = #tpu.dot_dimension_numbers<[1], [0], [0], [1], [0, 0, 1, 1], [], []>} : vector<16x64xbf16>, vector<64x128xbf16>, vector<16x128xf32> -> vector<16x128xf32>
    %18 = arith.addf %13, %17 : vector<16x128xf32>
    %19 = arith.truncf %18 : vector<16x128xf32> to vector<16x128xbf16>
    %c0_13 = arith.constant 0 : index
    %c0_14 = arith.constant 0 : index
    %c0_15 = arith.constant 0 : index
    %20 = vector.load %arg5[%c0_13, %c0_14, %c0_15] : memref<1x16x128xbf16, #tpu.memory_space<vmem>>, vector<1x16x128xbf16>
    %21 = vector.shape_cast %20 : vector<1x16x128xbf16> to vector<16x128xbf16>
    %22 = vector.shape_cast %19 : vector<16x128xbf16> to vector<1x16x128xbf16>
    tpu.vector_store %arg5[%c0_13, %c0_14, %c0_15], %22 {strides = array<i32>} : memref<1x16x128xbf16, #tpu.memory_space<vmem>>, vector<1x16x128xbf16>,
    %cst_16 = arith.constant dense<0.000000e+00> : vector<128xf32>
    %23 = vector.multi_reduction <add>, %18, %cst_16 [0] : vector<16x128xf32> to vector<128xf32>
    %24 = vector.shape_cast %23 : vector<128xf32> to vector<1x128xf32>
    %25 = arith.mulf %18, %18 : vector<16x128xf32>
    %cst_17 = arith.constant dense<0.000000e+00> : vector<128xf32>
    %26 = vector.multi_reduction <add>, %25, %cst_17 [0] : vector<16x128xf32> to vector<128xf32>
    %27 = vector.shape_cast %26 : vector<128xf32> to vector<1x128xf32>
    %28 = tpu.concatenate %24, %27 in 0 : vector<1x128xf32>, vector<1x128xf32> -> vector<2x128xf32>
    %c0_18 = arith.constant 0 : index
    %c0_19 = arith.constant 0 : index
    %29 = vector.load %arg4[%c0_18, %c0_19] : memref<128x8xf32, #tpu.memory_space<vmem>>, vector<128x8xf32>
    %cst_20 = arith.constant dense<0.000000e+00> : vector<2x8xf32>
    %30 = tpu.matmul %28, %29, %cst_20 {dimension_numbers = #tpu.dot_dimension_numbers<[1], [0], [0], [1], [0, 0, 1, 1], [], []>} : vector<2x128xf32>, vector<128x8xf32>, vector<2x8xf32> -> vector<2x8xf32>
    %c0_21 = arith.constant 0 : index
    %c0_22 = arith.constant 0 : index
    %c0_23 = arith.constant 0 : index
    %c0_24 = arith.constant 0 : index
    %31 = vector.load %arg6[%c0_21, %c0_22, %c0_23, %c0_24] : memref<1x1x2x8xf32, #tpu.memory_space<vmem>>, vector<1x1x2x8xf32>
    %32 = vector.shape_cast %31 : vector<1x1x2x8xf32> to vector<2x8xf32>
    %33 = vector.shape_cast %30 : vector<2x8xf32> to vector<1x1x2x8xf32>
    tpu.vector_store %arg6[%c0_21, %c0_22, %c0_23, %c0_24], %33 {strides = array<i32>} : memref<1x1x2x8xf32, #tpu.memory_space<vmem>>, vector<1x1x2x8xf32>,
    return
  }
  func.func @transform_0(%arg0: i32, %arg1: i32) -> (i32, i32, i32) {
    %c0_i32 = arith.constant 0 : i32
    %c0_i32_0 = arith.constant 0 : i32
    return %arg0, %arg1, %c0_i32 : i32, i32, i32
  }
  func.func @transform_1(%arg0: i32, %arg1: i32) -> (i32, i32, i32) {
    %c0_i32 = arith.constant 0 : i32
    %c0_i32_0 = arith.constant 0 : i32
    %c0_i32_1 = arith.constant 0 : i32
    %c0_i32_2 = arith.constant 0 : i32
    return %c0_i32, %c0_i32_0, %c0_i32_1 : i32, i32, i32
  }
  func.func @transform_2(%arg0: i32, %arg1: i32) -> (i32, i32) {
    %c0_i32 = arith.constant 0 : i32
    %c0_i32_0 = arith.constant 0 : i32
    %c0_i32_1 = arith.constant 0 : i32
    return %c0_i32, %c0_i32_0 : i32, i32
  }
  func.func @transform_3(%arg0: i32, %arg1: i32) -> (i32, i32, i32) {
    %c0_i32 = arith.constant 0 : i32
    %c0_i32_0 = arith.constant 0 : i32
    return %arg0, %arg1, %c0_i32 : i32, i32, i32
  }
  func.func @transform_4(%arg0: i32, %arg1: i32) -> (i32, i32, i32, i32) {
    %c0_i32 = arith.constant 0 : i32
    %c0_i32_0 = arith.constant 0 : i32
    %c0_i32_1 = arith.constant 0 : i32
    return %arg0, %arg1, %c0_i32, %c0_i32_0 : i32, i32, i32, i32
  }
}

</mosaic_0001>

<llo_original>
// kernel: depthwise_separable_conv.1
$region0: #{depthwise_separable_conv.1}
  #allocation0 [shape = 'u32[]', space=smem, size = 0x4, offset = 0x4, fixed_abs, tag = 'smem constant byte address 0x4 - core index']
  #allocation1 [shape = 'u32[144,128]{1,0:T(1,128)}', space=vmem, size = 0x12000, scoped, tag = 'internal scratch']
  %s0 = inlined_call_operand.vmem [shape: bf16[2,16,64], index: 0, kind: input, shape index: {}]
  %s1 = inlined_call_operand.vmem [shape: bf16[3,64,128], index: 1, kind: input, shape index: {}]
  %s2 = inlined_call_operand.vmem [shape: f32[128,8], index: 2, kind: input, shape index: {}]
  %s3 = inlined_call_operand.vmem [shape: bf16[2,16,128], index: 3, kind: output, shape index: {0}]
  %s4 = inlined_call_operand.vmem [shape: f32[2,1,2,8], index: 4, kind: output, shape index: {1}]
  %5 = xla_tuple %s3, %s4
  %s6 = sld [smem:[#allocation0]]
  $region53: #{depthwise_separable_conv.1} parent=0
    _
  %s8 = ssub.s32 1, %s6
  %s9 = scalar_select 0, %s8, %s6
  loop: start=0, step=1, limit=4
  $region2: #{depthwise_separable_conv.1} parent=0 // loop_pre_header
    _
  $region3: #{depthwise_separable_conv.1} parent=0 // loop_header
    %s11 = sphi 0, %s15
    %p12 = scmp.ge.s32.totalorder %s11, 4
    %s18 = sphi 0, %s30
    %s19 = sphi 0, %s26
    %s20 = sphi 0, %s18
    %s21 = sphi 0, %s19
    %s22 = sphi 0, %s20
    %s23 = sphi 0, %s21
    %s35 = sphi 0, %s37
    %s38 = sphi 0, %s35
    %s39 = sphi 0, %s38
    %s55 = sphi 0, %s39
    %s59 = sphi 0, %s59
    %s61 = sphi 0, %s59
    %s62 = sphi 0, %s61
    %s76 = sphi 0, %s62
    %s80 = sphi 0, %s80
    %s82 = sphi 0, %s80
    %s83 = sphi 0, %s82
    %s97 = sphi 0, %s83
    %s105 = sphi 0, %s107
    %s108 = sphi 0, %s105
    %s109 = sphi 0, %s108
    %s125 = sphi 0, %s109
    %s133 = sphi 0, %s135
    %s136 = sphi 0, %s133
    %s137 = sphi 0, %s136
    %s153 = sphi 0, %s137
  $region4: #{depthwise_separable_conv.1} parent=0 // loop_header_branch
    %14 = sbr.rel (%p12) target = $region8
  $region5: #{depthwise_separable_conv.1} parent=0 // loop_body
    %s16 = ssub.s32 %s11, 1
    %s17 = ssub.s32 %s11, 2
    %s24 = sadd.s32 1, %s19
    %p25 = scmp.ge.s32.totalorder %s24, 1
    %s26 = scalar_select %p25, 0, %s24
    %s27 = sadd.s32 1, %s18
    %s28 = scalar_select %p25, %s27, %s18
    %p29 = scmp.ge.s32.totalorder %s28, 2
    %s30 = scalar_select %p29, 0, %s28
    %s31 = ssub.s32 %s18, %s30
    %s32 = ssub.s32 %s19, %s26
    %s33 = sor.u32 %s31, %s32
    %p34 = scmp.eq.s32.totalorder %s33, 0
    %s36 = sadd.s32 %s35, 1
    %s37 = scalar_select %p34, %s35, %s36
    %p40 = pneg %p34
    %p41 = scmp.eq.s32.totalorder %s11, 1
    %p42 = por %p40, %p41
    %p43 = scmp.ne.s32.totalorder %s35, %s38
    %p44 = scmp.eq.s32.totalorder %s11, 0
    %p45 = por %p43, %p44
    %p46 = scmp.ne.s32.totalorder %s35, %s38
    %p47 = scmp.eq.s32.totalorder %s16, 1
    %p48 = por %p46, %p47
    %p49 = scmp.ne.s32.totalorder %s38, %s39
    %p50 = scmp.eq.s32.totalorder %s16, 0
    %p51 = por %p49, %p50
    %p52 = scmp.ne.s32.totalorder %s38, %s39
    %p53 = scmp.eq.s32.totalorder %s17, 1
    %p54 = por %p52, %p53
    %p56 = scmp.ne.s32.totalorder %s39, %s55
    %p57 = scmp.eq.s32.totalorder %s17, 0
    %p58 = por %p56, %p57
    %s60 = sadd.s32 %s59, 1
    %p63 = scmp.eq.s32.totalorder %s11, 1
    %p64 = scmp.ne.s32.totalorder %s59, %s61
    %p65 = scmp.eq.s32.totalorder %s11, 0
    %p66 = por %p64, %p65
    %p67 = scmp.ne.s32.totalorder %s59, %s61
    %p68 = scmp.eq.s32.totalorder %s16, 1
    %p69 = por %p67, %p68
    %p70 = scmp.ne.s32.totalorder %s61, %s62
    %p71 = scmp.eq.s32.totalorder %s16, 0
    %p72 = por %p70, %p71
    %p73 = scmp.ne.s32.totalorder %s61, %s62
    %p74 = scmp.eq.s32.totalorder %s17, 1
    %p75 = por %p73, %p74
    %p77 = scmp.ne.s32.totalorder %s62, %s76
    %p78 = scmp.eq.s32.totalorder %s17, 0
    %p79 = por %p77, %p78
    %s81 = sadd.s32 %s80, 1
    %p84 = scmp.eq.s32.totalorder %s11, 1
    %p85 = scmp.ne.s32.totalorder %s80, %s82
    %p86 = scmp.eq.s32.totalorder %s11, 0
    %p87 = por %p85, %p86
    %p88 = scmp.ne.s32.totalorder %s80, %s82
    %p89 = scmp.eq.s32.totalorder %s16, 1
    %p90 = por %p88, %p89
    %p91 = scmp.ne.s32.totalorder %s82, %s83
    %p92 = scmp.eq.s32.totalorder %s16, 0
    %p93 = por %p91, %p92
    %p94 = scmp.ne.s32.totalorder %s82, %s83
    %p95 = scmp.eq.s32.totalorder %s17, 1
    %p96 = por %p94, %p95
    %p98 = scmp.ne.s32.totalorder %s83, %s97
    %p99 = scmp.eq.s32.totalorder %s17, 0
    %p100 = por %p98, %p99
    %s101 = ssub.s32 %s18, %s30
    %s102 = ssub.s32 %s19, %s26
    %s103 = sor.u32 %s101, %s102
    %p104 = scmp.eq.s32.totalorder %s103, 0
    %s106 = sadd.s32 %s105, 1
    %s107 = scalar_select %p104, %s105, %s106
    %p110 = pneg %p104
    %p111 = scmp.eq.s32.totalorder %s11, 1
    %p112 = por %p110, %p111
    %p113 = scmp.ne.s32.totalorder %s105, %s108
    %p114 = scmp.eq.s32.totalorder %s11, 0
    %p115 = por %p113, %p114
    %p116 = scmp.ne.s32.totalorder %s105, %s108
    %p117 = scmp.eq.s32.totalorder %s16, 1
    %p118 = por %p116, %p117
    %p119 = scmp.ne.s32.totalorder %s108, %s109
    %p120 = scmp.eq.s32.totalorder %s16, 0
    %p121 = por %p119, %p120
    %p122 = scmp.ne.s32.totalorder %s108, %s109
    %p123 = scmp.eq.s32.totalorder %s17, 1
    %p124 = por %p122, %p123
    %p126 = scmp.ne.s32.totalorder %s109, %s125
    %p127 = scmp.eq.s32.totalorder %s17, 0
    %p128 = por %p126, %p127
    %s129 = ssub.s32 %s18, %s30
    %s130 = ssub.s32 %s19, %s26
    %s131 = sor.u32 %s129, %s130
    %p132 = scmp.eq.s32.totalorder %s131, 0
    %s134 = sadd.s32 %s133, 1
    %s135 = scalar_select %p132, %s133, %s134
    %p138 = pneg %p132
    %p139 = scmp.eq.s32.totalorder %s11, 1
    %p140 = por %p138, %p139
    %p141 = scmp.ne.s32.totalorder %s133, %s136
    %p142 = scmp.eq.s32.totalorder %s11, 0
    %p143 = por %p141, %p142
    %p144 = scmp.ne.s32.totalorder %s133, %s136
    %p145 = scmp.eq.s32.totalorder %s16, 1
    %p146 = por %p144, %p145
    %p147 = scmp.ne.s32.totalorder %s136, %s137
    %p148 = scmp.eq.s32.totalorder %s16, 0
    %p149 = por %p147, %p148
    %p150 = scmp.ne.s32.totalorder %s136, %s137
    %p151 = scmp.eq.s32.totalorder %s17, 1
    %p152 = por %p150, %p151
    %p154 = scmp.ne.s32.totalorder %s137, %s153
    %p155 = scmp.eq.s32.totalorder %s17, 0
    %p156 = por %p154, %p155
    %p157 = scmp.le.s32.totalorder 1, %s11
    %p158 = scmp.lt.s32.totalorder %s11, 3
    %p159 = pnand %p157, %p158
    %p160 = pneg %p159
    // Predicated region
    $region9: #{depthwise_separable_conv.1} parent=5 // pred_check
      _
    $region10: #{depthwise_separable_conv.1} parent=5 // pred_check_branch
      %162 = sbr.rel (%p159) target = $region12
    $region11: #{depthwise_separable_conv.1} parent=5 // pred_region
      %s163 = ssub.s32 %s11, 1
      // Predicated region
      $region13: #{depthwise_separable_conv.1} parent=11 // pred_check
        %p164 = pneg %p72
      $region14: #{depthwise_separable_conv.1} parent=11 // pred_check_branch
        %166 = sbr.rel (%p164) target = $region16
      $region15: #{depthwise_separable_conv.1} parent=11 // pred_region
        _
      $region16: #{depthwise_separable_conv.1} parent=11 // pred_fallthru
        _
      // Predicated region
      $region17: #{depthwise_separable_conv.1} parent=11 // pred_check
        %p167 = pneg %p93
      $region18: #{depthwise_separable_conv.1} parent=11 // pred_check_branch
        %169 = sbr.rel (%p167) target = $region20
      $region19: #{depthwise_separable_conv.1} parent=11 // pred_region
        _
      $region20: #{depthwise_separable_conv.1} parent=11 // pred_fallthru
        _
    $region12: #{depthwise_separable_conv.1} parent=5 // pred_fallthru
      _
    %p170 = scmp.lt.s32.totalorder %s11, 2
    // Predicated region
    $region21: #{depthwise_separable_conv.1} parent=5 // pred_check
      %p171 = pneg %p170
    $region22: #{depthwise_separable_conv.1} parent=5 // pred_check_branch
      %173 = sbr.rel (%p171) target = $region24
    $region23: #{depthwise_separable_conv.1} parent=5 // pred_region
      // Predicated region
      $region25: #{depthwise_separable_conv.1} parent=23 // pred_check
        %p174 = pneg %p45
      $region26: #{depthwise_separable_conv.1} parent=23 // pred_check_branch
        %176 = sbr.rel (%p174) target = $region28
      $region27: #{depthwise_separable_conv.1} parent=23 // pred_region
        %s177 = smul.u32 2, %s19
        %p178 = scmp.lt.s32.totalorder %s18, 1
        %s179 = scalar_select %p178, %s18, 1
        %p180 = scmp.lt.s32.totalorder %s177, 1
        %s181 = scalar_select %p180, %s177, 1
        %s182 = smul.addr %s179, 2
        %s183 = sadd.s32 %s181, %s182
        %s184 = smul.addr %s183, 4
        %s185 = scalar_lea.vmem %s0, %s184
        %s186 = smul.u32 2, %s19
      $region28: #{depthwise_separable_conv.1} parent=23 // pred_fallthru
        _
    $region24: #{depthwise_separable_conv.1} parent=5 // pred_fallthru
      _
    %p187 = scmp.le.s32.totalorder 1, %s11
    %p188 = scmp.lt.s32.totalorder %s11, 3
    %p189 = pnand %p187, %p188
    %p190 = pneg %p189
    // Predicated region
    $region29: #{depthwise_separable_conv.1} parent=5 // pred_check
      _
    $region30: #{depthwise_separable_conv.1} parent=5 // pred_check_branch
      %192 = sbr.rel (%p189) target = $region32
    $region31: #{depthwise_separable_conv.1} parent=5 // pred_region
      %s193 = ssub.s32 %s11, 1
      %s194 = smul.u32 2, %s21
      %p195 = scmp.lt.s32.totalorder %s20, 1
      %s196 = scalar_select %p195, %s20, 1
      %p197 = scmp.lt.s32.totalorder %s194, 1
      %s198 = scalar_select %p197, %s194, 1
      %s199 = smul.addr %s196, 2
      %s200 = sadd.s32 %s198, %s199
      %s201 = smul.addr %s200, 4
      %s202 = scalar_lea.vmem %s0, %s201
      %p203 = pneg %p51
      %p204 = pneg %p48
      %p205 = pneg %p72
      %p206 = pneg %p69
      %p207 = pneg %p93
      %p208 = pneg %p90
      %p209 = pneg %p121
      %p210 = pneg %p118
      %s211 = smul.u32 2, %s21
      %p212 = scmp.lt.s32.totalorder %s20, 1
      %s213 = scalar_select %p212, %s20, 1
      %p214 = scmp.lt.s32.totalorder %s211, 1
      %s215 = scalar_select %p214, %s211, 1
      %s216 = smul.addr %s213, 2
      %s217 = sadd.s32 %s215, %s216
      %s218 = smul.addr %s217, 4
      %s219 = scalar_lea.vmem %s3, %s218
      %p220 = pneg %p149
      %p221 = pneg %p146
      %p222 = scmp.lt.s32.totalorder %s20, 1
      %s223 = scalar_select %p222, %s20, 1
      %p224 = scmp.lt.s32.totalorder %s21, 0
      %s225 = scalar_select %p224, %s21, 0
      %s226 = sadd.s32 %s225, %s223
      %s227 = smul.addr %s226, 2
      %s228 = scalar_lea.vmem %s4, %s227
      %s229 = smul.u32 2, %s21
      %p230 = scmp.lt.s32.totalorder %s20, 1
      %s231 = scalar_select %p230, %s20, 1
      %p232 = scmp.lt.s32.totalorder %s229, 1
      %s233 = scalar_select %p232, %s229, 1
      %s234 = smul.addr %s231, 2
      %s235 = sadd.s32 %s233, %s234
      %s236 = smul.addr %s235, 4
      %s237 = scalar_lea.vmem %s0, %s236
      %s238 = smul.u32 2, %s21
      %s239 = smul.u32 2, %s21
      %p240 = scmp.lt.s32.totalorder %s20, 1
      %s241 = scalar_select %p240, %s20, 1
      %p242 = scmp.lt.s32.totalorder %s239, 1
      %s243 = scalar_select %p242, %s239, 1
      %s244 = smul.addr %s241, 2
      %s245 = sadd.s32 %s243, %s244
      %s246 = smul.addr %s245, 4
      %s247 = scalar_lea.vmem %s3, %s246
      %s248 = smul.u32 2, %s21
      %p249 = scmp.lt.s32.totalorder %s20, 1
      %s250 = scalar_select %p249, %s20, 1
      %p251 = scmp.lt.s32.totalorder %s21, 0
      %s252 = scalar_select %p251, %s21, 0
      %s253 = sadd.s32 %s252, %s250
      %s254 = smul.addr %s253, 2
      %s255 = scalar_lea.vmem %s4, %s254
      %v257 = vld [vmem:[%s237] sm:$0xf]
      %v258 = vld [vmem:[%s237 + $0x4] sm:$0xf]
      %v261 = vunpack.c.l.b16 %v257
      %v262 = vunpack.c.l.b16 %v258
      %v263 = vpack.c.b16 %v262, %v261
      %v265 = vshrl.u32 %v263, 16
      %v267 = vrot.slane %v265, 7
      %v268 = vshll.u32 %v263, 16
      %v270 = vor.u32 %v267, %v268
      %vm273 = vcmask 1040384
      %vm274 = vsmask.f32 256
      %vm275 = vmand %vm273, %vm274
      %v276 = vsel %vm275, 0, %v270
      %v277 = vsel %vm275, %v267, 0
      %v278 = vld [vmem:[%s1] sm:$0xf]
      %v279 = vld [vmem:[%s1 + $0x4] sm:$0xf]
      %v280 = vld [vmem:[%s1 + $0x8] sm:$0xf]
      %v281 = vld [vmem:[%s1 + $0xc] sm:$0xf]
      %v282 = vld [vmem:[%s1 + $0x10] sm:$0xf]
      %v283 = vld [vmem:[%s1 + $0x14] sm:$0xf]
      %v284 = vld [vmem:[%s1 + $0x18] sm:$0xf]
      %v285 = vld [vmem:[%s1 + $0x1c] sm:$0xf]
      %s286 = scalar_lea.vmem %s1, 32
      %v287 = vld [vmem:[%s286] sm:$0xf]
      %v288 = vld [vmem:[%s286 + $0x4] sm:$0xf]
      %v289 = vld [vmem:[%s286 + $0x8] sm:$0xf]
      %v290 = vld [vmem:[%s286 + $0xc] sm:$0xf]
      %v291 = vld [vmem:[%s286 + $0x10] sm:$0xf]
      %v292 = vld [vmem:[%s286 + $0x14] sm:$0xf]
      %v293 = vld [vmem:[%s286 + $0x18] sm:$0xf]
      %v294 = vld [vmem:[%s286 + $0x1c] sm:$0xf]
      %vm295 = vsmask.f32 7424
      %v297 = vshrl.u32 %v276, 16
      %v299 = vshll.u32 %v276, 16
      %v301 = vrot.slane %v299, 1
      %v302 = vor.u32 %v297, %v301
      %v304 = vshll.u32 %v277, 16
      %v306 = vrot.slane %v304, 1
      %v307 = vsel %vm295, %v302, %v306
      %v316 = vunpack.c.l.b16 %v287
      %v317 = vunpack.c.l.b16 %v288
      %v318 = vunpack.c.l.b16 %v289
      %v319 = vunpack.c.l.b16 %v290
      %v320 = vunpack.c.l.b16 %v291
      %v321 = vunpack.c.l.b16 %v292
      %v322 = vunpack.c.l.b16 %v293
      %v323 = vunpack.c.l.b16 %v294
      %v324 = vpack.c.b16 %v317, %v316
      %v325 = vpack.c.b16 %v319, %v318
      %v326 = vpack.c.b16 %v321, %v320
      %v327 = vpack.c.b16 %v323, %v322
      %vm332 = vcmask 523264
      %v334 = vsel %vm332, %v307, 0
      %336 = vmatprep.subr.bf16.mxu0 0
      %337 = vmatpush1.bf16.msra.mxu0 0
      %338 = vmatprep.subr.bf16.mxu0 0
      %339 = vmatpush1.bf16.msra.mxu0 0
      %340 = vmatprep.subr.bf16.mxu0 0
      %341 = vmatpush1.bf16.msra.mxu0 0
      %342 = vmatprep.subr.bf16.mxu0 0
      %343 = vmatpush1.bf16.msra.mxu0 0
      %344 = vmatprep.subr.bf16.mxu0 0
      %345 = vmatpush1.bf16.msra.mxu0 %v327
      %346 = vmatprep.subr.bf16.mxu0 0
      %347 = vmatpush1.bf16.msra.mxu0 %v326
      %348 = vmatprep.subr.bf16.mxu0 0
      %349 = vmatpush1.bf16.msra.mxu0 %v325
      %350 = vmatprep.subr.bf16.mxu0 0
      %351 = vmatpush1.bf16.msra.mxu0 %v324
      %352 = vmatprep.subr.bf16.mxu0 0
      %353 = vmatpush2.bf16.msra.mxu0 0
      %354 = vmatprep.subr.bf16.mxu0 0
      %355 = vmatpush2.bf16.msra.mxu0 0
      %356 = vmatprep.subr.bf16.mxu0 0
      %357 = vmatpush2.bf16.msra.mxu0 0
      %358 = vmatprep.subr.bf16.mxu0 0
      %359 = vmatpush2.bf16.msra.mxu0 0
      %360 = vmatprep.subr.bf16.mxu0 0
      %361 = vmatpush2.bf16.msra.mxu0 0
      %362 = vmatprep.subr.bf16.mxu0 0
      %363 = vmatpush2.bf16.msra.mxu0 0
      %364 = vmatprep.subr.bf16.mxu0 0
      %365 = vmatpush2.bf16.msra.mxu0 0
      %366 = vmatprep.subr.bf16.mxu0 0
      %367 = vmatpush2.bf16.msra.mxu0 0
      %368 = vmatprep.mubr.bf16.mxu0 0
      %369 = vmatmul.mubr.bf16.gmra.mxu0 %v334
      %v370 = vpop.f32.mrf.mxu0
      %v371 = vadd.f32 0.0, %v370
      %v372 = vpop.f32.mrf.mxu0
      %v373 = vpop.f32.mrf.mxu0
      %v374 = vadd.f32 0.0, %v373
      %v375 = vpop.f32.mrf.mxu0
      %376 = vdwg.mxu0
      %v385 = vunpack.c.l.b16 %v278
      %v386 = vunpack.c.l.b16 %v279
      %v387 = vunpack.c.l.b16 %v280
      %v388 = vunpack.c.l.b16 %v281
      %v389 = vunpack.c.l.b16 %v282
      %v390 = vunpack.c.l.b16 %v283
      %v391 = vunpack.c.l.b16 %v284
      %v392 = vunpack.c.l.b16 %v285
      %v393 = vpack.c.b16 %v386, %v385
      %v394 = vpack.c.b16 %v388, %v387
      %v395 = vpack.c.b16 %v390, %v389
      %v396 = vpack.c.b16 %v392, %v391
      %v401 = vsel %vm332, %v276, 0
      %403 = vmatprep.subr.bf16.mxu0 0
      %404 = vmatpush1.bf16.msra.mxu0 0
      %405 = vmatprep.subr.bf16.mxu0 0
      %406 = vmatpush1.bf16.msra.mxu0 0
      %407 = vmatprep.subr.bf16.mxu0 0
      %408 = vmatpush1.bf16.msra.mxu0 0
      %409 = vmatprep.subr.bf16.mxu0 0
      %410 = vmatpush1.bf16.msra.mxu0 0
      %411 = vmatprep.subr.bf16.mxu0 0
      %412 = vmatpush1.bf16.msra.mxu0 %v396
      %413 = vmatprep.subr.bf16.mxu0 0
      %414 = vmatpush1.bf16.msra.mxu0 %v395
      %415 = vmatprep.subr.bf16.mxu0 0
      %416 = vmatpush1.bf16.msra.mxu0 %v394
      %417 = vmatprep.subr.bf16.mxu0 0
      %418 = vmatpush1.bf16.msra.mxu0 %v393
      %419 = vmatprep.subr.bf16.mxu0 0
      %420 = vmatpush2.bf16.msra.mxu0 0
      %421 = vmatprep.subr.bf16.mxu0 0
      %422 = vmatpush2.bf16.msra.mxu0 0
      %423 = vmatprep.subr.bf16.mxu0 0
      %424 = vmatpush2.bf16.msra.mxu0 0
      %425 = vmatprep.subr.bf16.mxu0 0
      %426 = vmatpush2.bf16.msra.mxu0 0
      %427 = vmatprep.subr.bf16.mxu0 0
      %428 = vmatpush2.bf16.msra.mxu0 0
      %429 = vmatprep.subr.bf16.mxu0 0
      %430 = vmatpush2.bf16.msra.mxu0 0
      %431 = vmatprep.subr.bf16.mxu0 0
      %432 = vmatpush2.bf16.msra.mxu0 0
      %433 = vmatprep.subr.bf16.mxu0 0
      %434 = vmatpush2.bf16.msra.mxu0 0
      %435 = vmatprep.mubr.bf16.mxu0 0
      %436 = vmatmul.mubr.bf16.gmra.mxu0 %v401
      %v437 = vpop.f32.mrf.mxu0
      %v438 = vadd.f32 %v371, %v437
      %v439 = vpop.f32.mrf.mxu0
      %v440 = vpop.f32.mrf.mxu0
      %v441 = vadd.f32 %v374, %v440
      %v442 = vpop.f32.mrf.mxu0
      %443 = vdwg.mxu0
      %s444 = scalar_lea.vmem %s1, 64
      %v445 = vld [vmem:[%s444] sm:$0xf]
      %v446 = vld [vmem:[%s444 + $0x4] sm:$0xf]
      %v447 = vld [vmem:[%s444 + $0x8] sm:$0xf]
      %v448 = vld [vmem:[%s444 + $0xc] sm:$0xf]
      %v449 = vld [vmem:[%s444 + $0x10] sm:$0xf]
      %v450 = vld [vmem:[%s444 + $0x14] sm:$0xf]
      %v451 = vld [vmem:[%s444 + $0x18] sm:$0xf]
      %v452 = vld [vmem:[%s444 + $0x1c] sm:$0xf]
      %vm455 = vcmask 1046528
      %v456 = vrot.slane %v276, 1
      %v457 = vrot.slane %v277, 1
      %v458 = vsel %vm455, %v456, %v457
      %v467 = vunpack.c.l.b16 %v445
      %v468 = vunpack.c.l.b16 %v446
      %v469 = vunpack.c.l.b16 %v447
      %v470 = vunpack.c.l.b16 %v448
      %v471 = vunpack.c.l.b16 %v449
      %v472 = vunpack.c.l.b16 %v450
      %v473 = vunpack.c.l.b16 %v451
      %v474 = vunpack.c.l.b16 %v452
      %v475 = vpack.c.b16 %v468, %v467
      %v476 = vpack.c.b16 %v470, %v469
      %v477 = vpack.c.b16 %v472, %v471
      %v478 = vpack.c.b16 %v474, %v473
      %v484 = vsel %vm332, %v458, 0
      %486 = vmatprep.subr.bf16.mxu0 0
      %487 = vmatpush1.bf16.msra.mxu0 0
      %488 = vmatprep.subr.bf16.mxu0 0
      %489 = vmatpush1.bf16.msra.mxu0 0
      %490 = vmatprep.subr.bf16.mxu0 0
      %491 = vmatpush1.bf16.msra.mxu0 0
      %492 = vmatprep.subr.bf16.mxu0 0
      %493 = vmatpush1.bf16.msra.mxu0 0
      %494 = vmatprep.subr.bf16.mxu0 0
      %495 = vmatpush1.bf16.msra.mxu0 %v478
      %496 = vmatprep.subr.bf16.mxu0 0
      %497 = vmatpush1.bf16.msra.mxu0 %v477
      %498 = vmatprep.subr.bf16.mxu0 0
      %499 = vmatpush1.bf16.msra.mxu0 %v476
      %500 = vmatprep.subr.bf16.mxu0 0
      %501 = vmatpush1.bf16.msra.mxu0 %v475
      %502 = vmatprep.subr.bf16.mxu0 0
      %503 = vmatpush2.bf16.msra.mxu0 0
      %504 = vmatprep.subr.bf16.mxu0 0
      %505 = vmatpush2.bf16.msra.mxu0 0
      %506 = vmatprep.subr.bf16.mxu0 0
      %507 = vmatpush2.bf16.msra.mxu0 0
      %508 = vmatprep.subr.bf16.mxu0 0
      %509 = vmatpush2.bf16.msra.mxu0 0
      %510 = vmatprep.subr.bf16.mxu0 0
      %511 = vmatpush2.bf16.msra.mxu0 0
      %512 = vmatprep.subr.bf16.mxu0 0
      %513 = vmatpush2.bf16.msra.mxu0 0
      %514 = vmatprep.subr.bf16.mxu0 0
      %515 = vmatpush2.bf16.msra.mxu0 0
      %516 = vmatprep.subr.bf16.mxu0 0
      %517 = vmatpush2.bf16.msra.mxu0 0
      %518 = vmatprep.mubr.bf16.mxu0 0
      %519 = vmatmul.mubr.bf16.gmra.mxu0 %v484
      %v520 = vpop.f32.mrf.mxu0
      %v521 = vadd.f32 0.0, %v520
      %v522 = vpop.f32.mrf.mxu0
      %v523 = vpop.f32.mrf.mxu0
      %v524 = vadd.f32 0.0, %v523
      %v525 = vpop.f32.mrf.mxu0
      %526 = vdwg.mxu0
      %v527 = vadd.f32 %v438, %v521
      %v528 = vadd.f32 %v441, %v524
      %v529 = vpack.c.bf16 %v528, %v527
      %v531 = vunpack.c.l.b16 %v529
      %v532 = vunpack.c.h.b16 %v529
      %v533 = vpack.c.b16 %v531, %v531
      %v534 = vpack.c.b16 %v532, %v532
      %537 = vst [vmem:[%s247] sm:$0xf] %v533
      %538 = vst [vmem:[%s247 + $0x4] sm:$0xf] %v534
      %v539 = vadd.f32 %v527, %v528
      %v540 = vrot.slane %v539, 4
      %v541 = vadd.f32 %v539, %v540
      %v542 = vrot.slane %v541, 2
      %v543 = vadd.f32 %v541, %v542
      %v544 = vrot.slane %v543, 1
      %v545 = vadd.f32 %v543, %v544
      %v546 = vmul.f32 %v527, %v527
      %v547 = vmul.f32 %v528, %v528
      %v548 = vadd.f32 %v546, %v547
      %v549 = vrot.slane %v548, 4
      %v550 = vadd.f32 %v548, %v549
      %v551 = vrot.slane %v550, 2
      %v552 = vadd.f32 %v550, %v551
      %v553 = vrot.slane %v552, 1
      %v554 = vadd.f32 %v552, %v553
      %vm555 = vcmask 1040384
      %v556 = vsel %vm555, %v545, %v554
      %v557 = vld [vmem:[%s2] sm:$0xff]
      %v558 = vld [vmem:[%s2 + $0x8] sm:$0xff]
      %v559 = vld [vmem:[%s2 + $0x10] sm:$0xff]
      %v560 = vld [vmem:[%s2 + $0x18] sm:$0xff]
      %v561 = vld [vmem:[%s2 + $0x20] sm:$0xff]
      %v562 = vld [vmem:[%s2 + $0x28] sm:$0xff]
      %v563 = vld [vmem:[%s2 + $0x30] sm:$0xff]
      %v564 = vld [vmem:[%s2 + $0x38] sm:$0xff]
      %v565 = vld [vmem:[%s2 + $0x40] sm:$0xff]
      %v566 = vld [vmem:[%s2 + $0x48] sm:$0xff]
      %v567 = vld [vmem:[%s2 + $0x50] sm:$0xff]
      %v568 = vld [vmem:[%s2 + $0x58] sm:$0xff]
      %v569 = vld [vmem:[%s2 + $0x60] sm:$0xff]
      %v570 = vld [vmem:[%s2 + $0x68] sm:$0xff]
      %v571 = vld [vmem:[%s2 + $0x70] sm:$0xff]
      %v572 = vld [vmem:[%s2 + $0x78] sm:$0xff]
      %573 = vmatprep.subr.mxu0 0.0
      %574 = vmatpush1.msra.mxu0 %v572
      %575 = vmatprep.subr.mxu0 0.0
      %576 = vmatpush1.msra.mxu0 %v571
      %577 = vmatprep.subr.mxu0 0.0
      %578 = vmatpush1.msra.mxu0 %v570
      %579 = vmatprep.subr.mxu0 0.0
      %580 = vmatpush1.msra.mxu0 %v569
      %581 = vmatprep.subr.mxu0 0.0
      %582 = vmatpush1.msra.mxu0 %v568
      %583 = vmatprep.subr.mxu0 0.0
      %584 = vmatpush1.msra.mxu0 %v567
      %585 = vmatprep.subr.mxu0 0.0
      %586 = vmatpush1.msra.mxu0 %v566
      %587 = vmatprep.subr.mxu0 0.0
      %588 = vmatpush1.msra.mxu0 %v565
      %589 = vmatprep.subr.mxu0 0.0
      %590 = vmatpush1.msra.mxu0 %v564
      %591 = vmatprep.subr.mxu0 0.0
      %592 = vmatpush1.msra.mxu0 %v563
      %593 = vmatprep.subr.mxu0 0.0
      %594 = vmatpush1.msra.mxu0 %v562
      %595 = vmatprep.subr.mxu0 0.0
      %596 = vmatpush1.msra.mxu0 %v561
      %597 = vmatprep.subr.mxu0 0.0
      %598 = vmatpush1.msra.mxu0 %v560
      %599 = vmatprep.subr.mxu0 0.0
      %600 = vmatpush1.msra.mxu0 %v559
      %601 = vmatprep.subr.mxu0 0.0
      %602 = vmatpush1.msra.mxu0 %v558
      %603 = vmatprep.subr.mxu0 0.0
      %604 = vmatpush1.msra.mxu0 %v557
      %605 = vmatprep.subr.mxu0 0.0
      %606 = vmatpush2.msra.mxu0 0.0
      %607 = vmatprep.subr.mxu0 0.0
      %608 = vmatpush2.msra.mxu0 0.0
      %609 = vmatprep.subr.mxu0 0.0
      %610 = vmatpush2.msra.mxu0 0.0
      %611 = vmatprep.subr.mxu0 0.0
      %612 = vmatpush2.msra.mxu0 0.0
      %613 = vmatprep.subr.mxu0 0.0
      %614 = vmatpush2.msra.mxu0 0.0
      %615 = vmatprep.subr.mxu0 0.0
      %616 = vmatpush2.msra.mxu0 0.0
      %617 = vmatprep.subr.mxu0 0.0
      %618 = vmatpush2.msra.mxu0 0.0
      %619 = vmatprep.subr.mxu0 0.0
      %620 = vmatpush2.msra.mxu0 0.0
      %621 = vmatprep.subr.mxu0 0.0
      %622 = vmatpush2.msra.mxu0 0.0
      %623 = vmatprep.subr.mxu0 0.0
      %624 = vmatpush2.msra.mxu0 0.0
      %625 = vmatprep.subr.mxu0 0.0
      %626 = vmatpush2.msra.mxu0 0.0
      %627 = vmatprep.subr.mxu0 0.0
      %628 = vmatpush2.msra.mxu0 0.0
      %629 = vmatprep.subr.mxu0 0.0
      %630 = vmatpush2.msra.mxu0 0.0
      %631 = vmatprep.subr.mxu0 0.0
      %632 = vmatpush2.msra.mxu0 0.0
      %633 = vmatprep.subr.mxu0 0.0
      %634 = vmatpush2.msra.mxu0 0.0
      %635 = vmatprep.subr.mxu0 0.0
      %636 = vmatpush2.msra.mxu0 0.0
      %637 = vmatprep.mubr.f32.mxu0 0.0
      %638 = vmatmul.mubr.f32.gmra.mxu0 %v556
      %v639 = vpop.f32.mrf.mxu0
      %v640 = vadd.f32 0.0, %v639
      %v641 = vpop.f32.mrf.mxu0
      %642 = vdwg.mxu0
      %vm643 = vcmask 58368
      %644 = vst.msk [vmem:[%s255] sm:$0x3] %vm643, %v640
      %s645 = smul.u32 2, %s21
      %p646 = scmp.lt.s32.totalorder %s20, 1
      %s647 = scalar_select %p646, %s20, 1
      %p648 = scmp.lt.s32.totalorder %s645, 1
      %s649 = scalar_select %p648, %s645, 1
      %s650 = smul.addr %s647, 2
      %s651 = sadd.s32 %s649, %s650
      %s652 = smul.addr %s651, 4
      %s653 = scalar_lea.vmem %s3, %s652
      %p654 = scmp.lt.s32.totalorder %s20, 1
      %s655 = scalar_select %p654, %s20, 1
      %p656 = scmp.lt.s32.totalorder %s21, 0
      %s657 = scalar_select %p656, %s21, 0
      %s658 = sadd.s32 %s657, %s655
      %s659 = smul.addr %s658, 2
      %s660 = scalar_lea.vmem %s4, %s659
      // Predicated region
      $region33: #{depthwise_separable_conv.1} parent=31 // pred_check
        %p661 = pneg %p118
      $region34: #{depthwise_separable_conv.1} parent=31 // pred_check_branch
        %663 = sbr.rel (%p661) target = $region36
      $region35: #{depthwise_separable_conv.1} parent=31 // pred_region
        %s664 = smul.u32 2, %s21
      $region36: #{depthwise_separable_conv.1} parent=31 // pred_fallthru
        _
      // Predicated region
      $region37: #{depthwise_separable_conv.1} parent=31 // pred_check
        %p665 = pneg %p146
      $region38: #{depthwise_separable_conv.1} parent=31 // pred_check_branch
        %667 = sbr.rel (%p665) target = $region40
      $region39: #{depthwise_separable_conv.1} parent=31 // pred_region
        _
      $region40: #{depthwise_separable_conv.1} parent=31 // pred_fallthru
        _
    $region32: #{depthwise_separable_conv.1} parent=5 // pred_fallthru
      _
    %p668 = scmp.le.s32.totalorder 2, %s11
    // Predicated region
    $region41: #{depthwise_separable_conv.1} parent=5 // pred_check
      %p669 = pneg %p668
    $region42: #{depthwise_separable_conv.1} parent=5 // pred_check_branch
      %671 = sbr.rel (%p669) target = $region44
    $region43: #{depthwise_separable_conv.1} parent=5 // pred_region
      %s672 = ssub.s32 %s11, 2
      // Predicated region
      $region45: #{depthwise_separable_conv.1} parent=43 // pred_check
        %p673 = pneg %p124
      $region46: #{depthwise_separable_conv.1} parent=43 // pred_check_branch
        %675 = sbr.rel (%p673) target = $region48
      $region47: #{depthwise_separable_conv.1} parent=43 // pred_region
        %s676 = smul.u32 2, %s23
        %p677 = scmp.lt.s32.totalorder %s22, 1
        %s678 = scalar_select %p677, %s22, 1
        %p679 = scmp.lt.s32.totalorder %s676, 1
        %s680 = scalar_select %p679, %s676, 1
        %s681 = smul.addr %s678, 2
        %s682 = sadd.s32 %s680, %s681
        %s683 = smul.addr %s682, 4
        %s684 = scalar_lea.vmem %s3, %s683
      $region48: #{depthwise_separable_conv.1} parent=43 // pred_fallthru
        _
      // Predicated region
      $region49: #{depthwise_separable_conv.1} parent=43 // pred_check
        %p685 = pneg %p152
      $region50: #{depthwise_separable_conv.1} parent=43 // pred_check_branch
        %687 = sbr.rel (%p685) target = $region52
      $region51: #{depthwise_separable_conv.1} parent=43 // pred_region
        %p688 = scmp.lt.s32.totalorder %s22, 1
        %s689 = scalar_select %p688, %s22, 1
        %p690 = scmp.lt.s32.totalorder %s23, 0
        %s691 = scalar_select %p690, %s23, 0
        %s692 = sadd.s32 %s691, %s689
        %s693 = smul.addr %s692, 2
        %s694 = scalar_lea.vmem %s4, %s693
      $region52: #{depthwise_separable_conv.1} parent=43 // pred_fallthru
        _
    $region44: #{depthwise_separable_conv.1} parent=5 // pred_fallthru
      _
  $region6: #{depthwise_separable_conv.1} parent=0 // loop_footer
    %s15 = sadd.s32 1, %s11
  $region7: #{depthwise_separable_conv.1} parent=0 // loop_footer_branch
    %10 = sbr.rel target = $region3
  $region8: #{depthwise_separable_conv.1} parent=0 // loop_exit
    _

</llo_original>
